<compile_context>
chip_gen: v7x
topology: tpu7x:2x2x1
jax: 0.10.0
libtpu: 0.0.40
codegen_flags: <defaults>
</compile_context>

<pallas_src>
import jax
import jax.numpy as jnp
from jax.experimental import pallas as pl
from jax.experimental.pallas import tpu as pltpu


_LANES = 128                         # vreg lane width
_SUBLANES = 8                        # f32 sublane count
_FUSED_VMEM_BUDGET = 4 * 1024 * 1024  # payload bytes allowed on the single-step fused path
_TILE_BYTES_TARGET = 2 * 1024 * 1024  # per-tile payload target on the tiled path


# ---------------------------------------------------------------------------
# lane-dense reshaping helpers (glue, runs as plain XLA ops) -----------------
# ---------------------------------------------------------------------------

def _to_lane_dense(x):
    """Flatten x to a (rows, 128) view; rows padded to a multiple of 8."""
    n = x.size
    pad = (-n) % (_LANES * _SUBLANES)
    flat = x.reshape(-1)
    if pad:
        flat = jnp.pad(flat, (0, pad))
    return flat.reshape(-1, _LANES), n


def _from_lane_dense(y2d, n, shape):
    return y2d.reshape(-1)[:n].reshape(shape)


# ---------------------------------------------------------------------------
# Pallas kernels -------------------------------------------------------------
# ---------------------------------------------------------------------------

def _fused_copy_kernel(*refs):
    # refs = (in_0, ..., in_{k-1}, out_0, ..., out_{k-1}); whole arrays in VMEM.
    k = len(refs) // 2
    for i in range(k):
        refs[k + i][...] = refs[i][...]


def _tiled_copy_kernel(x_ref, o_ref):
    o_ref[...] = x_ref[...]


def _fused_identity(xs2d):
    """Copy several small lane-dense arrays in ONE pallas_call, one grid step."""
    out_shape = tuple(jax.ShapeDtypeStruct(x.shape, x.dtype) for x in xs2d)
    return pl.pallas_call(
        _fused_copy_kernel,
        out_shape=out_shape,
    )(*xs2d)


def _tiled_identity(x):
    """Identity copy of one (possibly large) array via a tiled lane-dense grid."""
    n = x.size
    itemsize = jnp.dtype(x.dtype).itemsize

    rows_min = pl.cdiv(n, _LANES)
    rows_min = pl.cdiv(rows_min, _SUBLANES) * _SUBLANES          # sublane-aligned rows
    cap = max(_SUBLANES,
              (_TILE_BYTES_TARGET // (_LANES * itemsize)) // _SUBLANES * _SUBLANES)
    tile_rows = min(rows_min, cap)                               # (tile_rows, 128) block
    rows = pl.cdiv(rows_min, tile_rows) * tile_rows              # grid divides evenly

    flat = x.reshape(-1)
    pad = rows * _LANES - n
    if pad:
        flat = jnp.pad(flat, (0, pad))
    x2d = flat.reshape(rows, _LANES)

    out2d = pl.pallas_call(
        _tiled_copy_kernel,
        out_shape=jax.ShapeDtypeStruct((rows, _LANES), x.dtype),
        grid_spec=pltpu.PrefetchScalarGridSpec(
            num_scalar_prefetch=0,
            grid=(rows // tile_rows,),
            in_specs=[pl.BlockSpec((tile_rows, _LANES), lambda i: (i, 0))],
            out_specs=pl.BlockSpec((tile_rows, _LANES), lambda i: (i, 0)),
        ),
        # "parallel" lets the grid shard across the 2 TensorCores on v7x.
        compiler_params=pltpu.CompilerParams(dimension_semantics=("parallel",)),
    )(x2d)
    return out2d.reshape(-1)[:n].reshape(x.shape)


def identity_forward(image, mask):
    arrays = (image, mask)
    total_bytes = sum(a.size * jnp.dtype(a.dtype).itemsize for a in arrays)
    if total_bytes <= _FUSED_VMEM_BUDGET:
        dense, meta = [], []
        for a in arrays:
            d, n = _to_lane_dense(a)
            dense.append(d)
            meta.append((n, a.shape))
        outs = _fused_identity(dense)
        return tuple(_from_lane_dense(o, n, shape)
                     for o, (n, shape) in zip(outs, meta))
    # Large inputs: per-tensor tiled copy (VMEM-sized, parallel grid).
    return tuple(_tiled_identity(a) for a in arrays)


# ---------------------------------------------------------------------------
# Module-equivalent wrapper ---------------------------------------------------
# ---------------------------------------------------------------------------

class Identity:
    """Pallas equivalent of the PyTorch Identity noise layer."""

    def __init__(self):
        pass

    def __call__(self, image, mask, *args, **kwargs):
        image_out, mask_out = identity_forward(image, mask)
        return image_out, mask_out


# ---------------------------------------------------------------------------
if __name__ == "__main__":
    key = jax.random.PRNGKey(0)
    k_img, k_msk = jax.random.split(key)

    B, C, H, W = 2, 4, 16, 16
    image = jax.random.normal(k_img, (B, C, H, W), dtype=jnp.float32)
    mask = (jax.random.uniform(k_msk, (B, 1, H, W)) > 0.5).astype(jnp.float32)

    layer = Identity()
    img_out, msk_out = layer(image, mask)
    jax.block_until_ready(img_out)
    jax.block_until_ready(msk_out)

    assert img_out.shape == image.shape and img_out.dtype == image.dtype
    assert msk_out.shape == mask.shape and msk_out.dtype == mask.dtype
    assert bool(jnp.array_equal(img_out, image))
    assert bool(jnp.array_equal(msk_out, mask))

    # Also exercise the tiled (large-input) path once for coverage.
    img_tiled = _tiled_identity(image)
    jax.block_until_ready(img_tiled)
    assert bool(jnp.array_equal(img_tiled, image))

    print("KERNEL_OK")
</pallas_src>

<mosaic_0001>
module attributes {stable_mosaic.version = 11 : i64} {
  func.func @_fused_copy_kernel(%arg0: memref<16x128xf32, #tpu.memory_space<vmem>>, %arg1: memref<8x128xf32, #tpu.memory_space<vmem>>, %arg2: memref<16x128xf32, #tpu.memory_space<vmem>>, %arg3: memref<8x128xf32, #tpu.memory_space<vmem>>) attributes {dimension_semantics = [], scalar_prefetch = 0 : i64, scratch_operands = 0 : i64, tpu.core_type = #tpu.core_type<tc>} {
    %c0 = arith.constant 0 : index
    %c0_0 = arith.constant 0 : index
    %0 = vector.load %arg0[%c0, %c0_0] : memref<16x128xf32, #tpu.memory_space<vmem>>, vector<16x128xf32>
    %c0_1 = arith.constant 0 : index
    %c0_2 = arith.constant 0 : index
    %1 = vector.load %arg2[%c0_1, %c0_2] : memref<16x128xf32, #tpu.memory_space<vmem>>, vector<16x128xf32>
    tpu.vector_store %arg2[%c0_1, %c0_2], %0 {strides = array<i32>} : memref<16x128xf32, #tpu.memory_space<vmem>>, vector<16x128xf32>,
    %c0_3 = arith.constant 0 : index
    %c0_4 = arith.constant 0 : index
    %2 = vector.load %arg1[%c0_3, %c0_4] : memref<8x128xf32, #tpu.memory_space<vmem>>, vector<8x128xf32>
    %c0_5 = arith.constant 0 : index
    %c0_6 = arith.constant 0 : index
    %3 = vector.load %arg3[%c0_5, %c0_6] : memref<8x128xf32, #tpu.memory_space<vmem>>, vector<8x128xf32>
    tpu.vector_store %arg3[%c0_5, %c0_6], %2 {strides = array<i32>} : memref<8x128xf32, #tpu.memory_space<vmem>>, vector<8x128xf32>,
    return
  }
}

</mosaic_0001>

<llo_original>
// kernel: tpu_custom_call.1
$region0: #{tpu_custom_call.1}
  #allocation0 [shape = 'u32[]', space=smem, size = 0x4, offset = 0x4, fixed_abs, tag = 'smem constant byte address 0x4 - core index']
  #allocation1 [shape = 'u32[144,128]{1,0:T(1,128)}', space=vmem, size = 0x12000, scoped, tag = 'internal scratch']
  %s0 = inlined_call_operand.hbm [shape: f32[16,128], index: 0, kind: input, shape index: {}]
  %s1 = inlined_call_operand.hbm [shape: f32[8,128], index: 1, kind: input, shape index: {}]
  %s2 = inlined_call_operand.hbm [shape: f32[16,128], index: 2, kind: output, shape index: {0}]
  %s3 = inlined_call_operand.hbm [shape: f32[8,128], index: 3, kind: output, shape index: {1}]
  %4 = xla_tuple %s2, %s3
  %s5 = sld [smem:[#allocation0]]
  $region34: #{tpu_custom_call.1} parent=0
    _
  %s7 = ssub.s32 1, %s5
  %s8 = scalar_select 0, %s7, %s5
  $region1: #{tpu_custom_call.1} parent=0
    #allocation2 [shape = 'u8[8192]{0}', space=vmem, size = 0x2000, scoped, tag = 'input window, operand 0, single buffered']
    #allocation3 [shape = 's32[1]{0}', space=sflag, size = 0x4, scoped, tag = 'scoped memory for tpu_custom_call.1']
    #allocation4 [shape = 's32[1]{0}', space=sflag, size = 0x4, scoped, tag = 'scoped memory for tpu_custom_call.1']
    #allocation5 [shape = 'u8[4096]{0}', space=vmem, size = 0x1000, scoped, tag = 'input window, operand 1, single buffered']
    #allocation6 [shape = 's32[1]{0}', space=sflag, size = 0x4, scoped, tag = 'scoped memory for tpu_custom_call.1']
    #allocation7 [shape = 'u8[8192]{0}', space=vmem, size = 0x2000, scoped, tag = 'output window, operand 0, single buffered']
    #allocation8 [shape = 'u8[4096]{0}', space=vmem, size = 0x1000, scoped, tag = 'output window, operand 1, single buffered']
    #allocation9 [shape = 's32[1]{0}', space=sflag, size = 0x4, scoped, tag = 'scoped memory for tpu_custom_call.1']
    %9 = vsyncpa [#allocation3], 0
    %10 = vsyncpa [#allocation6], 0
    %11 = vsyncpa [#allocation4], 0
    %12 = vsyncpa [#allocation9], 0
    // Predicated region
    $region2: #{tpu_custom_call.1} parent=1 // pred_check
      _
    $region3: #{tpu_custom_call.1} parent=1 // pred_check_branch
      %14 = sbr.rel (0) target = $region5
    $region4: #{tpu_custom_call.1} parent=1 // pred_region
      %s16 = ssub.s32 256, 256
      %17 = vsyncadd [#allocation3], %s16
      %s18 = sshll.u32 [#allocation2], 4
      %s19 = int_to_ptr.vmem [resolvable:$true] %s18
      %24 = dma.hbm_to_vmem [thread:$0]  %s0, 256, %s19, [#allocation3], 128, 128, 8
    $region5: #{tpu_custom_call.1} parent=1 // pred_fallthru
      _
    // Predicated region
    $region6: #{tpu_custom_call.1} parent=1 // pred_check
      _
    $region7: #{tpu_custom_call.1} parent=1 // pred_check_branch
      %26 = sbr.rel (0) target = $region9
    $region8: #{tpu_custom_call.1} parent=1 // pred_region
      %s28 = ssub.s32 128, 128
      %29 = vsyncadd [#allocation6], %s28
      %s31 = sshll.u32 [#allocation5], 4
      %s32 = int_to_ptr.vmem [resolvable:$true] %s31
      %34 = dma.hbm_to_vmem [thread:$0]  %s1, 128, %s32, [#allocation6]
    $region9: #{tpu_custom_call.1} parent=1 // pred_fallthru
      _
    // Predicated region
    $region10: #{tpu_custom_call.1} parent=1 // pred_check
      _
    $region11: #{tpu_custom_call.1} parent=1 // pred_check_branch
      %36 = sbr.rel (0) target = $region13
    $region12: #{tpu_custom_call.1} parent=1 // pred_region
      %37 = dma.done [#allocation3], 256
    $region13: #{tpu_custom_call.1} parent=1 // pred_fallthru
      _
    // Predicated region
    $region14: #{tpu_custom_call.1} parent=1 // pred_check
      _
    $region15: #{tpu_custom_call.1} parent=1 // pred_check_branch
      %39 = sbr.rel (0) target = $region17
    $region16: #{tpu_custom_call.1} parent=1 // pred_region
      %40 = dma.done [#allocation6], 128
    $region17: #{tpu_custom_call.1} parent=1 // pred_fallthru
      _
    %v41 = vld [vmem:[#allocation2] sm:$0xff]
    %v42 = vld [vmem:[#allocation2 + $0x8] sm:$0xff]
    %43 = vst [vmem:[#allocation7] sm:$0xff] %v41
    %44 = vst [vmem:[#allocation7 + $0x8] sm:$0xff] %v42
    %v45 = vld [vmem:[#allocation5] sm:$0xff]
    %46 = vst [vmem:[#allocation8] sm:$0xff] %v45
    // Predicated region
    $region18: #{tpu_custom_call.1} parent=1 // pred_check
      _
    $region19: #{tpu_custom_call.1} parent=1 // pred_check_branch
      %48 = sbr.rel (0) target = $region21
    $region20: #{tpu_custom_call.1} parent=1 // pred_region
      %s50 = ssub.s32 256, 256
      %51 = vsyncadd [#allocation4], %s50
      %s52 = sshll.u32 [#allocation7], 4
      %s53 = int_to_ptr.vmem [resolvable:$true] %s52
      %58 = dma.vmem_to_hbm [thread:$0]  %s53, 256, %s2, [#allocation4], 128, 128, 8
    $region21: #{tpu_custom_call.1} parent=1 // pred_fallthru
      _
    // Predicated region
    $region22: #{tpu_custom_call.1} parent=1 // pred_check
      _
    $region23: #{tpu_custom_call.1} parent=1 // pred_check_branch
      %60 = sbr.rel (0) target = $region25
    $region24: #{tpu_custom_call.1} parent=1 // pred_region
      %s62 = ssub.s32 128, 128
      %63 = vsyncadd [#allocation9], %s62
      %s65 = sshll.u32 [#allocation8], 4
      %s66 = int_to_ptr.vmem [resolvable:$true] %s65
      %68 = dma.vmem_to_hbm [thread:$0]  %s66, 128, %s3, [#allocation9]
    $region25: #{tpu_custom_call.1} parent=1 // pred_fallthru
      _
    // Predicated region
    $region26: #{tpu_custom_call.1} parent=1 // pred_check
      _
    $region27: #{tpu_custom_call.1} parent=1 // pred_check_branch
      %70 = sbr.rel (0) target = $region29
    $region28: #{tpu_custom_call.1} parent=1 // pred_region
      %71 = dma.done [#allocation4], 256
    $region29: #{tpu_custom_call.1} parent=1 // pred_fallthru
      _
    // Predicated region
    $region30: #{tpu_custom_call.1} parent=1 // pred_check
      _
    $region31: #{tpu_custom_call.1} parent=1 // pred_check_branch
      %73 = sbr.rel (0) target = $region33
    $region32: #{tpu_custom_call.1} parent=1 // pred_region
      %74 = dma.done [#allocation9], 128
    $region33: #{tpu_custom_call.1} parent=1 // pred_fallthru
      _
    %75 = vsyncpa [#allocation3], 1
    %76 = vsyncpa [#allocation6], 1
    %77 = vsyncpa [#allocation4], 1
    %78 = vsyncpa [#allocation9], 1

</llo_original>
